<compile_context>
chip_gen: v6e
topology: v6e:2x2x1
jax: 0.10.0
libtpu: 0.0.40
codegen_flags: <defaults>
</compile_context>

<pallas_src>
import functools

import jax
import jax.numpy as jnp
from jax import lax
from jax.experimental import pallas as pl
from jax.experimental.pallas import tpu as pltpu


def _round_up(x, m):
    return (x + m - 1) // m * m


def _pick_tile_b(batch, f_pad, u_pad, budget_bytes=12 << 20):
    """Largest batch-tile (multiple of 8, <=1024) that keeps the pipeline under budget."""
    # f32 bytes resident per batch row: double-buffered patches block + double-buffered
    # out block + activity/c temporaries.
    per_row = 4 * (2 * f_pad + 2 * f_pad + 2 * u_pad)
    # Resident dictionary operands: wr (F,U) + w_t (U,F) + G' (U,U).
    fixed = 4 * (2 * f_pad * u_pad + u_pad * u_pad)
    tb = max(8, (budget_bytes - fixed) // max(per_row, 1))
    tb = min(int(tb), 1024, _round_up(max(batch, 1), 8))
    return max(8, (tb // 8) * 8)


def _sparse_forward_kernel(patches_ref, wr_ref, wt_ref, gp_ref, out_ref, *,
                           epochs, thr, unroll):
    """Fused ISTA inference (Gram-matrix form) + dictionary reconstruction for one batch tile."""
    patches = patches_ref[...]          # (TB, F_pad)   f32
    wr = wr_ref[...]                    # (F_pad, U_pad) = rate * w
    wt = wt_ref[...]                    # (U_pad, F_pad) = w.T
    gp = gp_ref[...]                    # (U_pad, U_pad) = I - rate * (w.T @ w)

    # c = rate * (patches @ w): computed once per tile (rate folded into wr).
    c = jnp.dot(patches, wr, preferred_element_type=jnp.float32)      # (TB, U_pad)

    def step(_, a):
        # a - rate*((a@w.T - x)@w)  ==  a @ (I - rate*G) + rate*(x@w)  ==  a @ gp + c
        a = jnp.dot(a, gp, preferred_element_type=jnp.float32) + c
        # Soft-threshold (prox of L1) without jnp.sign: soft(a,t) = a - clip(a,-t,t)
        return a - jnp.clip(a, -thr, thr)

    a = lax.fori_loop(0, epochs, step, jnp.zeros_like(c), unroll=unroll)

    # Final reconstruction: a @ w.T, pre-transposed operand -> clean MXU feed,
    # lane-dense (F_pad multiple of 128) output store.
    out_ref[...] = jnp.dot(a, wt, preferred_element_type=jnp.float32).astype(out_ref.dtype)


def sparse_model_forward(patches, wr_padded, wt_padded, gp_padded, *,
                         dict_filter_size, activity_epochs, thr, tile_b=None):
    """Pallas equivalent of SparseModel.forward (batch-tiled, resident dictionary)."""
    f = int(dict_filter_size)
    f_pad, u_pad = wr_padded.shape

    patches = jnp.asarray(patches, jnp.float32).reshape(-1, f)
    batch = patches.shape[0]

    # Pad the filter (lane / contraction) dim once per call; padded columns are
    # zero and inert, sliced off below.
    if f_pad != f:
        patches = jnp.pad(patches, ((0, 0), (0, f_pad - f)))

    # Batch tiling: pad to a multiple of the tile; padded rows are zero -> zero
    # activity -> zero reconstruction rows, sliced off below.
    if tile_b is None:
        tile_b = _pick_tile_b(batch, f_pad, u_pad)
    batch_p = _round_up(max(batch, 1), tile_b)
    if batch_p != batch:
        patches = jnp.pad(patches, ((0, batch_p - batch), (0, 0)))

    epochs = int(activity_epochs)
    kernel = functools.partial(
        _sparse_forward_kernel,
        epochs=epochs,
        thr=float(thr),
        unroll=epochs if epochs <= 8 else 2,   # small partial unroll for large epoch counts
    )

    grid = (batch_p // tile_b,)
    out = pl.pallas_call(
        kernel,
        out_shape=jax.ShapeDtypeStruct((batch_p, f_pad), jnp.float32),
        grid=grid,
        in_specs=[
            pl.BlockSpec((tile_b, f_pad), lambda i: (i, 0)),   # patches tile
            pl.BlockSpec((f_pad, u_pad), lambda i: (0, 0)),    # wr = rate * w   (resident)
            pl.BlockSpec((u_pad, f_pad), lambda i: (0, 0)),    # w_t = w.T       (resident)
            pl.BlockSpec((u_pad, u_pad), lambda i: (0, 0)),    # G' = I - rate*G (resident)
        ],
        out_specs=pl.BlockSpec((tile_b, f_pad), lambda i: (i, 0)),
        compiler_params=pltpu.CompilerParams(
            dimension_semantics=("parallel",),     # shard batch tiles across TCs (v7x megacore)
            vmem_limit_bytes=48 << 20,             # explicit headroom (v5e default is 16 MiB)
        ),
    )(patches, wr_padded, wt_padded, gp_padded)

    return out[:batch, :f]


def sparse_model_forward_ref(patches, w, *, activity_epochs, rate, sparsity_coef):
    """Plain-JAX reference (original, un-reassociated ISTA formulation)."""
    patches = jnp.asarray(patches, jnp.float32).reshape(-1, w.shape[0])
    a = jnp.zeros((patches.shape[0], w.shape[1]), jnp.float32)
    thr = rate * sparsity_coef
    for _ in range(activity_epochs):
        r = a @ w.T - patches
        g = r @ w
        a = a - rate * g
        a = a - jnp.clip(a, -thr, thr)
    return a @ w.T


class SparseModel:
    """JAX/Pallas mirror of the PyTorch SparseModel (forward only)."""

    def __init__(self, units, dict_filter_size, activity_epochs, rate, sparsity_coef, key):
        self.units = units
        self.dict_filter_size = dict_filter_size
        self.activity_epochs = activity_epochs
        self.rate = float(rate)
        self.sparsity_coef = float(sparsity_coef)
        self.thr = self.rate * self.sparsity_coef

        # Dictionary w: (dict_filter_size, units); unit-norm atoms (columns),
        # the usual sparse-coding convention (keeps the ISTA step stable).
        w = jax.random.normal(key, (dict_filter_size, units), dtype=jnp.float32)
        w = w / jnp.linalg.norm(w, axis=0, keepdims=True)
        self.w = w

        # Pad BOTH dims to multiples of 128 once at init.  Padded atoms / rows
        # are zero and never contribute to activity or reconstruction.
        f_pad = _round_up(dict_filter_size, 128)
        u_pad = _round_up(units, 128)          # keep at the minimum 128 multiple
        w_p = jnp.zeros((f_pad, u_pad), jnp.float32).at[:dict_filter_size, :units].set(w)

        # Precomputed, rate-folded operands for the Gram-matrix ISTA loop.
        self.wr_padded = self.rate * w_p                                   # (F_pad, U_pad)
        self.wt_padded = jnp.asarray(w_p.T)                                # (U_pad, F_pad)
        gram = jnp.dot(w_p.T, w_p, preferred_element_type=jnp.float32)     # (U_pad, U_pad)
        self.gp_padded = jnp.eye(u_pad, dtype=jnp.float32) - self.rate * gram

    def forward(self, patches):
        return sparse_model_forward(
            patches,
            self.wr_padded,
            self.wt_padded,
            self.gp_padded,
            dict_filter_size=self.dict_filter_size,
            activity_epochs=self.activity_epochs,
            thr=self.thr,
        )


if __name__ == "__main__":
    key = jax.random.PRNGKey(0)
    k_w, k_x = jax.random.split(key)

    units = 32              # number of dictionary atoms (padded to 128 internally)
    dict_filter_size = 128  # filter size (lane-dense output last dim)
    batch = 16              # batch of patches
    activity_epochs = 5
    rate = 0.1
    sparsity_coef = 0.1

    model = SparseModel(units, dict_filter_size, activity_epochs, rate, sparsity_coef, k_w)
    patches = jax.random.normal(k_x, (batch, dict_filter_size), dtype=jnp.float32)

    out = model.forward(patches)
    out = jax.block_until_ready(out)

    ref = sparse_model_forward_ref(
        patches, model.w,
        activity_epochs=activity_epochs, rate=rate, sparsity_coef=sparsity_coef,
    )
    assert out.shape == (batch, dict_filter_size)
    # Gram-matrix reassociation is mathematically identical but not bit-exact vs
    # the naive formulation -> slightly looser tolerance.
    max_err = float(jnp.max(jnp.abs(out - ref)))
    assert jnp.allclose(out, ref, atol=1e-3, rtol=1e-3), max_err

    print("KERNEL_OK")
</pallas_src>

<mosaic_0001>
module attributes {stable_mosaic.version = 11 : i64} {
  func.func @_sparse_forward_kernel(%arg0: i32, %arg1: memref<16x128xf32, #tpu.memory_space<vmem>>, %arg2: memref<128x128xf32, #tpu.memory_space<vmem>>, %arg3: memref<128x128xf32, #tpu.memory_space<vmem>>, %arg4: memref<128x128xf32, #tpu.memory_space<vmem>>, %arg5: memref<16x128xf32, #tpu.memory_space<vmem>>) attributes {dimension_semantics = [#tpu.dimension_semantics<parallel>], iteration_bounds = array<i64: 1>, scalar_prefetch = 0 : i64, scratch_operands = 0 : i64, tpu.core_type = #tpu.core_type<tc>, window_params = [{transform_indices = @transform_0, window_bounds = array<i64: 16, 128>}, {pipeline_mode = #tpu.pipeline_mode<synchronous>, transform_indices = @transform_1, window_bounds = array<i64: 128, 128>}, {pipeline_mode = #tpu.pipeline_mode<synchronous>, transform_indices = @transform_2, window_bounds = array<i64: 128, 128>}, {pipeline_mode = #tpu.pipeline_mode<synchronous>, transform_indices = @transform_3, window_bounds = array<i64: 128, 128>}, {transform_indices = @transform_4, window_bounds = array<i64: 16, 128>}]} {
    %c0 = arith.constant 0 : index
    %c0_0 = arith.constant 0 : index
    %0 = vector.load %arg1[%c0, %c0_0] : memref<16x128xf32, #tpu.memory_space<vmem>>, vector<16x128xf32>
    %c0_1 = arith.constant 0 : index
    %c0_2 = arith.constant 0 : index
    %1 = vector.load %arg2[%c0_1, %c0_2] : memref<128x128xf32, #tpu.memory_space<vmem>>, vector<128x128xf32>
    %c0_3 = arith.constant 0 : index
    %c0_4 = arith.constant 0 : index
    %2 = vector.load %arg3[%c0_3, %c0_4] : memref<128x128xf32, #tpu.memory_space<vmem>>, vector<128x128xf32>
    %c0_5 = arith.constant 0 : index
    %c0_6 = arith.constant 0 : index
    %3 = vector.load %arg4[%c0_5, %c0_6] : memref<128x128xf32, #tpu.memory_space<vmem>>, vector<128x128xf32>
    %cst = arith.constant dense<0.000000e+00> : vector<16x128xf32>
    %4 = tpu.matmul %0, %1, %cst {dimension_numbers = #tpu.dot_dimension_numbers<[1], [0], [0], [1], [0, 0, 1, 1], [], []>} : vector<16x128xf32>, vector<128x128xf32>, vector<16x128xf32> -> vector<16x128xf32>
    %cst_7 = arith.constant 0.000000e+00 : f32
    %5 = vector.broadcast %cst_7 : f32 to vector<16x128xf32>
    %c0_i32 = arith.constant 0 : i32
    %cst_8 = arith.constant dense<0.000000e+00> : vector<16x128xf32>
    %6 = tpu.matmul %5, %3, %cst_8 {dimension_numbers = #tpu.dot_dimension_numbers<[1], [0], [0], [1], [0, 0, 1, 1], [], []>} : vector<16x128xf32>, vector<128x128xf32>, vector<16x128xf32> -> vector<16x128xf32>
    %7 = arith.addf %6, %4 : vector<16x128xf32>
    %cst_9 = arith.constant -0.00999999977 : f32
    %cst_10 = arith.constant 0.00999999977 : f32
    %8 = vector.broadcast %cst_9 : f32 to vector<16x128xf32>
    %9 = arith.maximumf %8, %7 : vector<16x128xf32>
    %10 = vector.broadcast %cst_10 : f32 to vector<16x128xf32>
    %11 = arith.minimumf %10, %9 : vector<16x128xf32>
    %12 = arith.subf %7, %11 : vector<16x128xf32>
    %c1_i32 = arith.constant 1 : i32
    %cst_11 = arith.constant dense<0.000000e+00> : vector<16x128xf32>
    %13 = tpu.matmul %12, %3, %cst_11 {dimension_numbers = #tpu.dot_dimension_numbers<[1], [0], [0], [1], [0, 0, 1, 1], [], []>} : vector<16x128xf32>, vector<128x128xf32>, vector<16x128xf32> -> vector<16x128xf32>
    %14 = arith.addf %13, %4 : vector<16x128xf32>
    %cst_12 = arith.constant -0.00999999977 : f32
    %cst_13 = arith.constant 0.00999999977 : f32
    %15 = vector.broadcast %cst_12 : f32 to vector<16x128xf32>
    %16 = arith.maximumf %15, %14 : vector<16x128xf32>
    %17 = vector.broadcast %cst_13 : f32 to vector<16x128xf32>
    %18 = arith.minimumf %17, %16 : vector<16x128xf32>
    %19 = arith.subf %14, %18 : vector<16x128xf32>
    %c2_i32 = arith.constant 2 : i32
    %cst_14 = arith.constant dense<0.000000e+00> : vector<16x128xf32>
    %20 = tpu.matmul %19, %3, %cst_14 {dimension_numbers = #tpu.dot_dimension_numbers<[1], [0], [0], [1], [0, 0, 1, 1], [], []>} : vector<16x128xf32>, vector<128x128xf32>, vector<16x128xf32> -> vector<16x128xf32>
    %21 = arith.addf %20, %4 : vector<16x128xf32>
    %cst_15 = arith.constant -0.00999999977 : f32
    %cst_16 = arith.constant 0.00999999977 : f32
    %22 = vector.broadcast %cst_15 : f32 to vector<16x128xf32>
    %23 = arith.maximumf %22, %21 : vector<16x128xf32>
    %24 = vector.broadcast %cst_16 : f32 to vector<16x128xf32>
    %25 = arith.minimumf %24, %23 : vector<16x128xf32>
    %26 = arith.subf %21, %25 : vector<16x128xf32>
    %c3_i32 = arith.constant 3 : i32
    %cst_17 = arith.constant dense<0.000000e+00> : vector<16x128xf32>
    %27 = tpu.matmul %26, %3, %cst_17 {dimension_numbers = #tpu.dot_dimension_numbers<[1], [0], [0], [1], [0, 0, 1, 1], [], []>} : vector<16x128xf32>, vector<128x128xf32>, vector<16x128xf32> -> vector<16x128xf32>
    %28 = arith.addf %27, %4 : vector<16x128xf32>
    %cst_18 = arith.constant -0.00999999977 : f32
    %cst_19 = arith.constant 0.00999999977 : f32
    %29 = vector.broadcast %cst_18 : f32 to vector<16x128xf32>
    %30 = arith.maximumf %29, %28 : vector<16x128xf32>
    %31 = vector.broadcast %cst_19 : f32 to vector<16x128xf32>
    %32 = arith.minimumf %31, %30 : vector<16x128xf32>
    %33 = arith.subf %28, %32 : vector<16x128xf32>
    %c4_i32 = arith.constant 4 : i32
    %cst_20 = arith.constant dense<0.000000e+00> : vector<16x128xf32>
    %34 = tpu.matmul %33, %3, %cst_20 {dimension_numbers = #tpu.dot_dimension_numbers<[1], [0], [0], [1], [0, 0, 1, 1], [], []>} : vector<16x128xf32>, vector<128x128xf32>, vector<16x128xf32> -> vector<16x128xf32>
    %35 = arith.addf %34, %4 : vector<16x128xf32>
    %cst_21 = arith.constant -0.00999999977 : f32
    %cst_22 = arith.constant 0.00999999977 : f32
    %36 = vector.broadcast %cst_21 : f32 to vector<16x128xf32>
    %37 = arith.maximumf %36, %35 : vector<16x128xf32>
    %38 = vector.broadcast %cst_22 : f32 to vector<16x128xf32>
    %39 = arith.minimumf %38, %37 : vector<16x128xf32>
    %40 = arith.subf %35, %39 : vector<16x128xf32>
    %cst_23 = arith.constant dense<0.000000e+00> : vector<16x128xf32>
    %41 = tpu.matmul %40, %2, %cst_23 {dimension_numbers = #tpu.dot_dimension_numbers<[1], [0], [0], [1], [0, 0, 1, 1], [], []>} : vector<16x128xf32>, vector<128x128xf32>, vector<16x128xf32> -> vector<16x128xf32>
    %c0_24 = arith.constant 0 : index
    %c0_25 = arith.constant 0 : index
    %42 = vector.load %arg5[%c0_24, %c0_25] : memref<16x128xf32, #tpu.memory_space<vmem>>, vector<16x128xf32>
    tpu.vector_store %arg5[%c0_24, %c0_25], %41 {strides = array<i32>} : memref<16x128xf32, #tpu.memory_space<vmem>>, vector<16x128xf32>,
    return
  }
  func.func @transform_0(%arg0: i32) -> (i32, i32) {
    %c0_i32 = arith.constant 0 : i32
    %c0_i32_0 = arith.constant 0 : i32
    return %arg0, %c0_i32 : i32, i32
  }
  func.func @transform_1(%arg0: i32) -> (i32, i32) {
    %c0_i32 = arith.constant 0 : i32
    %c0_i32_0 = arith.constant 0 : i32
    %c0_i32_1 = arith.constant 0 : i32
    return %c0_i32, %c0_i32_0 : i32, i32
  }
  func.func @transform_2(%arg0: i32) -> (i32, i32) {
    %c0_i32 = arith.constant 0 : i32
    %c0_i32_0 = arith.constant 0 : i32
    %c0_i32_1 = arith.constant 0 : i32
    return %c0_i32, %c0_i32_0 : i32, i32
  }
  func.func @transform_3(%arg0: i32) -> (i32, i32) {
    %c0_i32 = arith.constant 0 : i32
    %c0_i32_0 = arith.constant 0 : i32
    %c0_i32_1 = arith.constant 0 : i32
    return %c0_i32, %c0_i32_0 : i32, i32
  }
  func.func @transform_4(%arg0: i32) -> (i32, i32) {
    %c0_i32 = arith.constant 0 : i32
    %c0_i32_0 = arith.constant 0 : i32
    return %arg0, %c0_i32 : i32, i32
  }
}

</mosaic_0001>

<llo_original>
// kernel: tpu_custom_call.1
$region0: #{tpu_custom_call.1}
  #allocation0 [shape = 'u32[]', space=smem, size = 0x4, offset = 0x4, fixed_abs, tag = 'smem constant byte address 0x4 - core index']
  #allocation1 [shape = 'u32[144,128]{1,0:T(1,128)}', space=vmem, size = 0x12000, scoped, tag = 'internal scratch']
  %s0 = inlined_call_operand.hbm [shape: f32[16,128], index: 0, kind: input, shape index: {}]
  %s1 = inlined_call_operand.hbm [shape: f32[128,128], index: 1, kind: input, shape index: {}]
  %s2 = inlined_call_operand.hbm [shape: f32[128,128], index: 2, kind: input, shape index: {}]
  %s3 = inlined_call_operand.hbm [shape: f32[128,128], index: 3, kind: input, shape index: {}]
  %s4 = inlined_call_operand.hbm [shape: f32[16,128], index: 4, kind: output, shape index: {}]
  %s5 = sld [smem:[#allocation0]]
  $region42: #{tpu_custom_call.1} parent=0
    _
  %s7 = ssub.s32 1, %s5
  %s8 = scalar_select 0, %s7, %s5
  $region1: #{tpu_custom_call.1} parent=0
    #allocation2 [shape = 'u8[8192]{0}', space=vmem, size = 0x2000, scoped, tag = 'input window, operand 0, single buffered']
    #allocation3 [shape = 's32[1]{0}', space=sflag, size = 0x4, scoped, tag = 'scoped memory for tpu_custom_call.1']
    #allocation4 [shape = 's32[1]{0}', space=sflag, size = 0x4, scoped, tag = 'scoped memory for tpu_custom_call.1']
    #allocation5 [shape = 'u8[65536]{0}', space=vmem, size = 0x10000, scoped, tag = 'input window, operand 1, single buffered']
    #allocation6 [shape = 's32[1]{0}', space=sflag, size = 0x4, scoped, tag = 'scoped memory for tpu_custom_call.1']
    #allocation7 [shape = 'u8[65536]{0}', space=vmem, size = 0x10000, scoped, tag = 'input window, operand 2, single buffered']
    #allocation8 [shape = 'u8[65536]{0}', space=vmem, size = 0x10000, scoped, tag = 'input window, operand 3, single buffered']
    #allocation9 [shape = 's32[1]{0}', space=sflag, size = 0x4, scoped, tag = 'scoped memory for tpu_custom_call.1']
    #allocation10 [shape = 'u8[8192]{0}', space=vmem, size = 0x2000, scoped, tag = 'output window, operand 0, single buffered']
    %9 = vsyncpa [#allocation3], 0
    %10 = vsyncpa [#allocation6], 0
    %11 = vsyncpa [#allocation9], 0
    %12 = vsyncpa [#allocation4], 0
    // Predicated region
    $region2: #{tpu_custom_call.1} parent=1 // pred_check
      _
    $region3: #{tpu_custom_call.1} parent=1 // pred_check_branch
      %14 = sbr.rel (0) target = $region5
    $region4: #{tpu_custom_call.1} parent=1 // pred_region
      %s16 = ssub.s32 256, 256
      %17 = vsyncadd [#allocation3], %s16
      %s18 = sshll.u32 [#allocation2], 4
      %s19 = int_to_ptr.vmem [resolvable:$true] %s18
      %24 = dma.hbm_to_vmem [thread:$0]  %s0, 256, %s19, [#allocation3], 128, 128, 8
    $region5: #{tpu_custom_call.1} parent=1 // pred_fallthru
      _
    // Predicated region
    $region6: #{tpu_custom_call.1} parent=1 // pred_check
      _
    $region7: #{tpu_custom_call.1} parent=1 // pred_check_branch
      %26 = sbr.rel (0) target = $region9
    $region8: #{tpu_custom_call.1} parent=1 // pred_region
      %s28 = ssub.s32 2048, 2048
      %29 = vsyncadd [#allocation6], %s28
      %s30 = sshll.u32 [#allocation5], 4
      %s31 = int_to_ptr.vmem [resolvable:$true] %s30
      %36 = dma.hbm_to_vmem [thread:$0]  %s1, 2048, %s31, [#allocation6], 128, 128, 8
    $region9: #{tpu_custom_call.1} parent=1 // pred_fallthru
      _
    // Predicated region
    $region10: #{tpu_custom_call.1} parent=1 // pred_check
      _
    $region11: #{tpu_custom_call.1} parent=1 // pred_check_branch
      %38 = sbr.rel (0) target = $region13
    $region12: #{tpu_custom_call.1} parent=1 // pred_region
      %s40 = ssub.s32 2048, 2048
      %41 = vsyncadd [#allocation6], %s40
      %s42 = sshll.u32 [#allocation7], 4
      %s43 = int_to_ptr.vmem [resolvable:$true] %s42
      %48 = dma.hbm_to_vmem [thread:$0]  %s2, 2048, %s43, [#allocation6], 128, 128, 8
    $region13: #{tpu_custom_call.1} parent=1 // pred_fallthru
      _
    // Predicated region
    $region14: #{tpu_custom_call.1} parent=1 // pred_check
      _
    $region15: #{tpu_custom_call.1} parent=1 // pred_check_branch
      %50 = sbr.rel (0) target = $region17
    $region16: #{tpu_custom_call.1} parent=1 // pred_region
      %s52 = ssub.s32 2048, 2048
      %53 = vsyncadd [#allocation9], %s52
      %s54 = sshll.u32 [#allocation8], 4
      %s55 = int_to_ptr.vmem [resolvable:$true] %s54
      %60 = dma.hbm_to_vmem [thread:$0]  %s3, 2048, %s55, [#allocation9], 128, 128, 8
    $region17: #{tpu_custom_call.1} parent=1 // pred_fallthru
      _
    // Predicated region
    $region18: #{tpu_custom_call.1} parent=1 // pred_check
      _
    $region19: #{tpu_custom_call.1} parent=1 // pred_check_branch
      %62 = sbr.rel (0) target = $region21
    $region20: #{tpu_custom_call.1} parent=1 // pred_region
      %63 = dma.done [#allocation3], 256
    $region21: #{tpu_custom_call.1} parent=1 // pred_fallthru
      _
    // Predicated region
    $region22: #{tpu_custom_call.1} parent=1 // pred_check
      _
    $region23: #{tpu_custom_call.1} parent=1 // pred_check_branch
      %65 = sbr.rel (0) target = $region25
    $region24: #{tpu_custom_call.1} parent=1 // pred_region
      %66 = dma.done [#allocation6], 2048
    $region25: #{tpu_custom_call.1} parent=1 // pred_fallthru
      _
    // Predicated region
    $region26: #{tpu_custom_call.1} parent=1 // pred_check
      _
    $region27: #{tpu_custom_call.1} parent=1 // pred_check_branch
      %68 = sbr.rel (0) target = $region29
    $region28: #{tpu_custom_call.1} parent=1 // pred_region
      %69 = dma.done [#allocation6], 2048
    $region29: #{tpu_custom_call.1} parent=1 // pred_fallthru
      _
    // Predicated region
    $region30: #{tpu_custom_call.1} parent=1 // pred_check
      _
    $region31: #{tpu_custom_call.1} parent=1 // pred_check_branch
      %71 = sbr.rel (0) target = $region33
    $region32: #{tpu_custom_call.1} parent=1 // pred_region
      %72 = dma.done [#allocation9], 2048
    $region33: #{tpu_custom_call.1} parent=1 // pred_fallthru
      _
    %v73 = vld [vmem:[#allocation2] sm:$0xff]
    %v74 = vld [vmem:[#allocation2 + $0x8] sm:$0xff]
    %v75 = vld [vmem:[#allocation5] sm:$0xff]
    %v76 = vld [vmem:[#allocation5 + $0x8] sm:$0xff]
    %v77 = vld [vmem:[#allocation5 + $0x10] sm:$0xff]
    %v78 = vld [vmem:[#allocation5 + $0x18] sm:$0xff]
    %v79 = vld [vmem:[#allocation5 + $0x20] sm:$0xff]
    %v80 = vld [vmem:[#allocation5 + $0x28] sm:$0xff]
    %v81 = vld [vmem:[#allocation5 + $0x30] sm:$0xff]
    %v82 = vld [vmem:[#allocation5 + $0x38] sm:$0xff]
    %v83 = vld [vmem:[#allocation5 + $0x40] sm:$0xff]
    %v84 = vld [vmem:[#allocation5 + $0x48] sm:$0xff]
    %v85 = vld [vmem:[#allocation5 + $0x50] sm:$0xff]
    %v86 = vld [vmem:[#allocation5 + $0x58] sm:$0xff]
    %v87 = vld [vmem:[#allocation5 + $0x60] sm:$0xff]
    %v88 = vld [vmem:[#allocation5 + $0x68] sm:$0xff]
    %v89 = vld [vmem:[#allocation5 + $0x70] sm:$0xff]
    %v90 = vld [vmem:[#allocation5 + $0x78] sm:$0xff]
    %v91 = vld [vmem:[#allocation7] sm:$0xff]
    %v92 = vld [vmem:[#allocation7 + $0x8] sm:$0xff]
    %v93 = vld [vmem:[#allocation7 + $0x10] sm:$0xff]
    %v94 = vld [vmem:[#allocation7 + $0x18] sm:$0xff]
    %v95 = vld [vmem:[#allocation7 + $0x20] sm:$0xff]
    %v96 = vld [vmem:[#allocation7 + $0x28] sm:$0xff]
    %v97 = vld [vmem:[#allocation7 + $0x30] sm:$0xff]
    %v98 = vld [vmem:[#allocation7 + $0x38] sm:$0xff]
    %v99 = vld [vmem:[#allocation7 + $0x40] sm:$0xff]
    %v100 = vld [vmem:[#allocation7 + $0x48] sm:$0xff]
    %v101 = vld [vmem:[#allocation7 + $0x50] sm:$0xff]
    %v102 = vld [vmem:[#allocation7 + $0x58] sm:$0xff]
    %v103 = vld [vmem:[#allocation7 + $0x60] sm:$0xff]
    %v104 = vld [vmem:[#allocation7 + $0x68] sm:$0xff]
    %v105 = vld [vmem:[#allocation7 + $0x70] sm:$0xff]
    %v106 = vld [vmem:[#allocation7 + $0x78] sm:$0xff]
    %v107 = vld [vmem:[#allocation8] sm:$0xff]
    %v108 = vld [vmem:[#allocation8 + $0x8] sm:$0xff]
    %v109 = vld [vmem:[#allocation8 + $0x10] sm:$0xff]
    %v110 = vld [vmem:[#allocation8 + $0x18] sm:$0xff]
    %v111 = vld [vmem:[#allocation8 + $0x20] sm:$0xff]
    %v112 = vld [vmem:[#allocation8 + $0x28] sm:$0xff]
    %v113 = vld [vmem:[#allocation8 + $0x30] sm:$0xff]
    %v114 = vld [vmem:[#allocation8 + $0x38] sm:$0xff]
    %v115 = vld [vmem:[#allocation8 + $0x40] sm:$0xff]
    %v116 = vld [vmem:[#allocation8 + $0x48] sm:$0xff]
    %v117 = vld [vmem:[#allocation8 + $0x50] sm:$0xff]
    %v118 = vld [vmem:[#allocation8 + $0x58] sm:$0xff]
    %v119 = vld [vmem:[#allocation8 + $0x60] sm:$0xff]
    %v120 = vld [vmem:[#allocation8 + $0x68] sm:$0xff]
    %v121 = vld [vmem:[#allocation8 + $0x70] sm:$0xff]
    %v122 = vld [vmem:[#allocation8 + $0x78] sm:$0xff]
    %123 = vmatprep.subr.mxu0 0.0
    %124 = vmatpush1.msra.mxu0 %v90
    %125 = vmatprep.subr.mxu0 0.0
    %126 = vmatpush1.msra.mxu0 %v89
    %127 = vmatprep.subr.mxu0 0.0
    %128 = vmatpush1.msra.mxu0 %v88
    %129 = vmatprep.subr.mxu0 0.0
    %130 = vmatpush1.msra.mxu0 %v87
    %131 = vmatprep.subr.mxu0 0.0
    %132 = vmatpush1.msra.mxu0 %v86
    %133 = vmatprep.subr.mxu0 0.0
    %134 = vmatpush1.msra.mxu0 %v85
    %135 = vmatprep.subr.mxu0 0.0
    %136 = vmatpush1.msra.mxu0 %v84
    %137 = vmatprep.subr.mxu0 0.0
    %138 = vmatpush1.msra.mxu0 %v83
    %139 = vmatprep.subr.mxu0 0.0
    %140 = vmatpush1.msra.mxu0 %v82
    %141 = vmatprep.subr.mxu0 0.0
    %142 = vmatpush1.msra.mxu0 %v81
    %143 = vmatprep.subr.mxu0 0.0
    %144 = vmatpush1.msra.mxu0 %v80
    %145 = vmatprep.subr.mxu0 0.0
    %146 = vmatpush1.msra.mxu0 %v79
    %147 = vmatprep.subr.mxu0 0.0
    %148 = vmatpush1.msra.mxu0 %v78
    %149 = vmatprep.subr.mxu0 0.0
    %150 = vmatpush1.msra.mxu0 %v77
    %151 = vmatprep.subr.mxu0 0.0
    %152 = vmatpush1.msra.mxu0 %v76
    %153 = vmatprep.subr.mxu0 0.0
    %154 = vmatpush1.msra.mxu0 %v75
    %155 = vmatprep.subr.mxu0 0.0
    %156 = vmatpush2.msra.mxu0 0.0
    %157 = vmatprep.subr.mxu0 0.0
    %158 = vmatpush2.msra.mxu0 0.0
    %159 = vmatprep.subr.mxu0 0.0
    %160 = vmatpush2.msra.mxu0 0.0
    %161 = vmatprep.subr.mxu0 0.0
    %162 = vmatpush2.msra.mxu0 0.0
    %163 = vmatprep.subr.mxu0 0.0
    %164 = vmatpush2.msra.mxu0 0.0
    %165 = vmatprep.subr.mxu0 0.0
    %166 = vmatpush2.msra.mxu0 0.0
    %167 = vmatprep.subr.mxu0 0.0
    %168 = vmatpush2.msra.mxu0 0.0
    %169 = vmatprep.subr.mxu0 0.0
    %170 = vmatpush2.msra.mxu0 0.0
    %171 = vmatprep.subr.mxu0 0.0
    %172 = vmatpush2.msra.mxu0 0.0
    %173 = vmatprep.subr.mxu0 0.0
    %174 = vmatpush2.msra.mxu0 0.0
    %175 = vmatprep.subr.mxu0 0.0
    %176 = vmatpush2.msra.mxu0 0.0
    %177 = vmatprep.subr.mxu0 0.0
    %178 = vmatpush2.msra.mxu0 0.0
    %179 = vmatprep.subr.mxu0 0.0
    %180 = vmatpush2.msra.mxu0 0.0
    %181 = vmatprep.subr.mxu0 0.0
    %182 = vmatpush2.msra.mxu0 0.0
    %183 = vmatprep.subr.mxu0 0.0
    %184 = vmatpush2.msra.mxu0 0.0
    %185 = vmatprep.subr.mxu0 0.0
    %186 = vmatpush2.msra.mxu0 0.0
    %187 = vmatprep.mubr.f32.mxu0 0.0
    %188 = vmatmul.mubr.f32.gmra.mxu0 %v73
    %v189 = vpop.f32.mrf.mxu0
    %v190 = vadd.f32 0.0, %v189
    %v191 = vpop.f32.mrf.mxu0
    %192 = vmatprep.mubr.f32.mxu0 0.0
    %193 = vmatmul.mubr.f32.gmra.mxu0 %v74
    %v194 = vpop.f32.mrf.mxu0
    %v195 = vadd.f32 0.0, %v194
    %v196 = vpop.f32.mrf.mxu0
    %197 = vdwg.mxu0
    %198 = vmatprep.subr.mxu0 0.0
    %199 = vmatpush1.msra.mxu0 %v122
    %200 = vmatprep.subr.mxu0 0.0
    %201 = vmatpush1.msra.mxu0 %v121
    %202 = vmatprep.subr.mxu0 0.0
    %203 = vmatpush1.msra.mxu0 %v120
    %204 = vmatprep.subr.mxu0 0.0
    %205 = vmatpush1.msra.mxu0 %v119
    %206 = vmatprep.subr.mxu0 0.0
    %207 = vmatpush1.msra.mxu0 %v118
    %208 = vmatprep.subr.mxu0 0.0
    %209 = vmatpush1.msra.mxu0 %v117
    %210 = vmatprep.subr.mxu0 0.0
    %211 = vmatpush1.msra.mxu0 %v116
    %212 = vmatprep.subr.mxu0 0.0
    %213 = vmatpush1.msra.mxu0 %v115
    %214 = vmatprep.subr.mxu0 0.0
    %215 = vmatpush1.msra.mxu0 %v114
    %216 = vmatprep.subr.mxu0 0.0
    %217 = vmatpush1.msra.mxu0 %v113
    %218 = vmatprep.subr.mxu0 0.0
    %219 = vmatpush1.msra.mxu0 %v112
    %220 = vmatprep.subr.mxu0 0.0
    %221 = vmatpush1.msra.mxu0 %v111
    %222 = vmatprep.subr.mxu0 0.0
    %223 = vmatpush1.msra.mxu0 %v110
    %224 = vmatprep.subr.mxu0 0.0
    %225 = vmatpush1.msra.mxu0 %v109
    %226 = vmatprep.subr.mxu0 0.0
    %227 = vmatpush1.msra.mxu0 %v108
    %228 = vmatprep.subr.mxu0 0.0
    %229 = vmatpush1.msra.mxu0 %v107
    %230 = vmatprep.subr.mxu0 0.0
    %231 = vmatpush2.msra.mxu0 0.0
    %232 = vmatprep.subr.mxu0 0.0
    %233 = vmatpush2.msra.mxu0 0.0
    %234 = vmatprep.subr.mxu0 0.0
    %235 = vmatpush2.msra.mxu0 0.0
    %236 = vmatprep.subr.mxu0 0.0
    %237 = vmatpush2.msra.mxu0 0.0
    %238 = vmatprep.subr.mxu0 0.0
    %239 = vmatpush2.msra.mxu0 0.0
    %240 = vmatprep.subr.mxu0 0.0
    %241 = vmatpush2.msra.mxu0 0.0
    %242 = vmatprep.subr.mxu0 0.0
    %243 = vmatpush2.msra.mxu0 0.0
    %244 = vmatprep.subr.mxu0 0.0
    %245 = vmatpush2.msra.mxu0 0.0
    %246 = vmatprep.subr.mxu0 0.0
    %247 = vmatpush2.msra.mxu0 0.0
    %248 = vmatprep.subr.mxu0 0.0
    %249 = vmatpush2.msra.mxu0 0.0
    %250 = vmatprep.subr.mxu0 0.0
    %251 = vmatpush2.msra.mxu0 0.0
    %252 = vmatprep.subr.mxu0 0.0
    %253 = vmatpush2.msra.mxu0 0.0
    %254 = vmatprep.subr.mxu0 0.0
    %255 = vmatpush2.msra.mxu0 0.0
    %256 = vmatprep.subr.mxu0 0.0
    %257 = vmatpush2.msra.mxu0 0.0
    %258 = vmatprep.subr.mxu0 0.0
    %259 = vmatpush2.msra.mxu0 0.0
    %260 = vmatprep.subr.mxu0 0.0
    %261 = vmatpush2.msra.mxu0 0.0
    %262 = vmatprep.mubr.f32.mxu0 0.0
    %263 = vmatmul.mubr.f32.gmra.mxu0 0.0
    %v264 = vpop.f32.mrf.mxu0
    %v265 = vadd.f32 %v190, %v264
    %v266 = vpop.f32.mrf.mxu0
    %267 = vmatprep.mubr.f32.mxu0 0.0
    %268 = vmatmul.mubr.f32.gmra.mxu0 0.0
    %v269 = vpop.f32.mrf.mxu0
    %v270 = vadd.f32 %v195, %v269
    %v271 = vpop.f32.mrf.mxu0
    %272 = vdwg.mxu0
    %v273 = vmax.f32 %v265, -0.01
    %v274 = vmax.f32 %v270, -0.01
    %v275 = vmin.f32 %v273, 0.01
    %v276 = vmin.f32 %v274, 0.01
    %v277 = vsub.f32 %v265, %v275
    %v278 = vsub.f32 %v270, %v276
    %279 = vmatprep.subr.mxu0 0.0
    %280 = vmatpush1.msra.mxu0 %v122
    %281 = vmatprep.subr.mxu0 0.0
    %282 = vmatpush1.msra.mxu0 %v121
    %283 = vmatprep.subr.mxu0 0.0
    %284 = vmatpush1.msra.mxu0 %v120
    %285 = vmatprep.subr.mxu0 0.0
    %286 = vmatpush1.msra.mxu0 %v119
    %287 = vmatprep.subr.mxu0 0.0
    %288 = vmatpush1.msra.mxu0 %v118
    %289 = vmatprep.subr.mxu0 0.0
    %290 = vmatpush1.msra.mxu0 %v117
    %291 = vmatprep.subr.mxu0 0.0
    %292 = vmatpush1.msra.mxu0 %v116
    %293 = vmatprep.subr.mxu0 0.0
    %294 = vmatpush1.msra.mxu0 %v115
    %295 = vmatprep.subr.mxu0 0.0
    %296 = vmatpush1.msra.mxu0 %v114
    %297 = vmatprep.subr.mxu0 0.0
    %298 = vmatpush1.msra.mxu0 %v113
    %299 = vmatprep.subr.mxu0 0.0
    %300 = vmatpush1.msra.mxu0 %v112
    %301 = vmatprep.subr.mxu0 0.0
    %302 = vmatpush1.msra.mxu0 %v111
    %303 = vmatprep.subr.mxu0 0.0
    %304 = vmatpush1.msra.mxu0 %v110
    %305 = vmatprep.subr.mxu0 0.0
    %306 = vmatpush1.msra.mxu0 %v109
    %307 = vmatprep.subr.mxu0 0.0
    %308 = vmatpush1.msra.mxu0 %v108
    %309 = vmatprep.subr.mxu0 0.0
    %310 = vmatpush1.msra.mxu0 %v107
    %311 = vmatprep.subr.mxu0 0.0
    %312 = vmatpush2.msra.mxu0 0.0
    %313 = vmatprep.subr.mxu0 0.0
    %314 = vmatpush2.msra.mxu0 0.0
    %315 = vmatprep.subr.mxu0 0.0
    %316 = vmatpush2.msra.mxu0 0.0
    %317 = vmatprep.subr.mxu0 0.0
    %318 = vmatpush2.msra.mxu0 0.0
    %319 = vmatprep.subr.mxu0 0.0
    %320 = vmatpush2.msra.mxu0 0.0
    %321 = vmatprep.subr.mxu0 0.0
    %322 = vmatpush2.msra.mxu0 0.0
    %323 = vmatprep.subr.mxu0 0.0
    %324 = vmatpush2.msra.mxu0 0.0
    %325 = vmatprep.subr.mxu0 0.0
    %326 = vmatpush2.msra.mxu0 0.0
    %327 = vmatprep.subr.mxu0 0.0
    %328 = vmatpush2.msra.mxu0 0.0
    %329 = vmatprep.subr.mxu0 0.0
    %330 = vmatpush2.msra.mxu0 0.0
    %331 = vmatprep.subr.mxu0 0.0
    %332 = vmatpush2.msra.mxu0 0.0
    %333 = vmatprep.subr.mxu0 0.0
    %334 = vmatpush2.msra.mxu0 0.0
    %335 = vmatprep.subr.mxu0 0.0
    %336 = vmatpush2.msra.mxu0 0.0
    %337 = vmatprep.subr.mxu0 0.0
    %338 = vmatpush2.msra.mxu0 0.0
    %339 = vmatprep.subr.mxu0 0.0
    %340 = vmatpush2.msra.mxu0 0.0
    %341 = vmatprep.subr.mxu0 0.0
    %342 = vmatpush2.msra.mxu0 0.0
    %343 = vmatprep.mubr.f32.mxu0 0.0
    %344 = vmatmul.mubr.f32.gmra.mxu0 %v277
    %v345 = vpop.f32.mrf.mxu0
    %v346 = vadd.f32 %v190, %v345
    %v347 = vpop.f32.mrf.mxu0
    %348 = vmatprep.mubr.f32.mxu0 0.0
    %349 = vmatmul.mubr.f32.gmra.mxu0 %v278
    %v350 = vpop.f32.mrf.mxu0
    %v351 = vadd.f32 %v195, %v350
    %v352 = vpop.f32.mrf.mxu0
    %353 = vdwg.mxu0
    %v354 = vmax.f32 %v346, -0.01
    %v355 = vmax.f32 %v351, -0.01
    %v356 = vmin.f32 %v354, 0.01
    %v357 = vmin.f32 %v355, 0.01
    %v358 = vsub.f32 %v346, %v356
    %v359 = vsub.f32 %v351, %v357
    %360 = vmatprep.subr.mxu0 0.0
    %361 = vmatpush1.msra.mxu0 %v122
    %362 = vmatprep.subr.mxu0 0.0
    %363 = vmatpush1.msra.mxu0 %v121
    %364 = vmatprep.subr.mxu0 0.0
    %365 = vmatpush1.msra.mxu0 %v120
    %366 = vmatprep.subr.mxu0 0.0
    %367 = vmatpush1.msra.mxu0 %v119
    %368 = vmatprep.subr.mxu0 0.0
    %369 = vmatpush1.msra.mxu0 %v118
    %370 = vmatprep.subr.mxu0 0.0
    %371 = vmatpush1.msra.mxu0 %v117
    %372 = vmatprep.subr.mxu0 0.0
    %373 = vmatpush1.msra.mxu0 %v116
    %374 = vmatprep.subr.mxu0 0.0
    %375 = vmatpush1.msra.mxu0 %v115
    %376 = vmatprep.subr.mxu0 0.0
    %377 = vmatpush1.msra.mxu0 %v114
    %378 = vmatprep.subr.mxu0 0.0
    %379 = vmatpush1.msra.mxu0 %v113
    %380 = vmatprep.subr.mxu0 0.0
    %381 = vmatpush1.msra.mxu0 %v112
    %382 = vmatprep.subr.mxu0 0.0
    %383 = vmatpush1.msra.mxu0 %v111
    %384 = vmatprep.subr.mxu0 0.0
    %385 = vmatpush1.msra.mxu0 %v110
    %386 = vmatprep.subr.mxu0 0.0
    %387 = vmatpush1.msra.mxu0 %v109
    %388 = vmatprep.subr.mxu0 0.0
    %389 = vmatpush1.msra.mxu0 %v108
    %390 = vmatprep.subr.mxu0 0.0
    %391 = vmatpush1.msra.mxu0 %v107
    %392 = vmatprep.subr.mxu0 0.0
    %393 = vmatpush2.msra.mxu0 0.0
    %394 = vmatprep.subr.mxu0 0.0
    %395 = vmatpush2.msra.mxu0 0.0
    %396 = vmatprep.subr.mxu0 0.0
    %397 = vmatpush2.msra.mxu0 0.0
    %398 = vmatprep.subr.mxu0 0.0
    %399 = vmatpush2.msra.mxu0 0.0
    %400 = vmatprep.subr.mxu0 0.0
    %401 = vmatpush2.msra.mxu0 0.0
    %402 = vmatprep.subr.mxu0 0.0
    %403 = vmatpush2.msra.mxu0 0.0
    %404 = vmatprep.subr.mxu0 0.0
    %405 = vmatpush2.msra.mxu0 0.0
    %406 = vmatprep.subr.mxu0 0.0
    %407 = vmatpush2.msra.mxu0 0.0
    %408 = vmatprep.subr.mxu0 0.0
    %409 = vmatpush2.msra.mxu0 0.0
    %410 = vmatprep.subr.mxu0 0.0
    %411 = vmatpush2.msra.mxu0 0.0
    %412 = vmatprep.subr.mxu0 0.0
    %413 = vmatpush2.msra.mxu0 0.0
    %414 = vmatprep.subr.mxu0 0.0
    %415 = vmatpush2.msra.mxu0 0.0
    %416 = vmatprep.subr.mxu0 0.0
    %417 = vmatpush2.msra.mxu0 0.0
    %418 = vmatprep.subr.mxu0 0.0
    %419 = vmatpush2.msra.mxu0 0.0
    %420 = vmatprep.subr.mxu0 0.0
    %421 = vmatpush2.msra.mxu0 0.0
    %422 = vmatprep.subr.mxu0 0.0
    %423 = vmatpush2.msra.mxu0 0.0
    %424 = vmatprep.mubr.f32.mxu0 0.0
    %425 = vmatmul.mubr.f32.gmra.mxu0 %v358
    %v426 = vpop.f32.mrf.mxu0
    %v427 = vadd.f32 %v190, %v426
    %v428 = vpop.f32.mrf.mxu0
    %429 = vmatprep.mubr.f32.mxu0 0.0
    %430 = vmatmul.mubr.f32.gmra.mxu0 %v359
    %v431 = vpop.f32.mrf.mxu0
    %v432 = vadd.f32 %v195, %v431
    %v433 = vpop.f32.mrf.mxu0
    %434 = vdwg.mxu0
    %v435 = vmax.f32 %v427, -0.01
    %v436 = vmax.f32 %v432, -0.01
    %v437 = vmin.f32 %v435, 0.01
    %v438 = vmin.f32 %v436, 0.01
    %v439 = vsub.f32 %v427, %v437
    %v440 = vsub.f32 %v432, %v438
    %441 = vmatprep.subr.mxu0 0.0
    %442 = vmatpush1.msra.mxu0 %v122
    %443 = vmatprep.subr.mxu0 0.0
    %444 = vmatpush1.msra.mxu0 %v121
    %445 = vmatprep.subr.mxu0 0.0
    %446 = vmatpush1.msra.mxu0 %v120
    %447 = vmatprep.subr.mxu0 0.0
    %448 = vmatpush1.msra.mxu0 %v119
    %449 = vmatprep.subr.mxu0 0.0
    %450 = vmatpush1.msra.mxu0 %v118
    %451 = vmatprep.subr.mxu0 0.0
    %452 = vmatpush1.msra.mxu0 %v117
    %453 = vmatprep.subr.mxu0 0.0
    %454 = vmatpush1.msra.mxu0 %v116
    %455 = vmatprep.subr.mxu0 0.0
    %456 = vmatpush1.msra.mxu0 %v115
    %457 = vmatprep.subr.mxu0 0.0
    %458 = vmatpush1.msra.mxu0 %v114
    %459 = vmatprep.subr.mxu0 0.0
    %460 = vmatpush1.msra.mxu0 %v113
    %461 = vmatprep.subr.mxu0 0.0
    %462 = vmatpush1.msra.mxu0 %v112
    %463 = vmatprep.subr.mxu0 0.0
    %464 = vmatpush1.msra.mxu0 %v111
    %465 = vmatprep.subr.mxu0 0.0
    %466 = vmatpush1.msra.mxu0 %v110
    %467 = vmatprep.subr.mxu0 0.0
    %468 = vmatpush1.msra.mxu0 %v109
    %469 = vmatprep.subr.mxu0 0.0
    %470 = vmatpush1.msra.mxu0 %v108
    %471 = vmatprep.subr.mxu0 0.0
    %472 = vmatpush1.msra.mxu0 %v107
    %473 = vmatprep.subr.mxu0 0.0
    %474 = vmatpush2.msra.mxu0 0.0
    %475 = vmatprep.subr.mxu0 0.0
    %476 = vmatpush2.msra.mxu0 0.0
    %477 = vmatprep.subr.mxu0 0.0
    %478 = vmatpush2.msra.mxu0 0.0
    %479 = vmatprep.subr.mxu0 0.0
    %480 = vmatpush2.msra.mxu0 0.0
    %481 = vmatprep.subr.mxu0 0.0
    %482 = vmatpush2.msra.mxu0 0.0
    %483 = vmatprep.subr.mxu0 0.0
    %484 = vmatpush2.msra.mxu0 0.0
    %485 = vmatprep.subr.mxu0 0.0
    %486 = vmatpush2.msra.mxu0 0.0
    %487 = vmatprep.subr.mxu0 0.0
    %488 = vmatpush2.msra.mxu0 0.0
    %489 = vmatprep.subr.mxu0 0.0
    %490 = vmatpush2.msra.mxu0 0.0
    %491 = vmatprep.subr.mxu0 0.0
    %492 = vmatpush2.msra.mxu0 0.0
    %493 = vmatprep.subr.mxu0 0.0
    %494 = vmatpush2.msra.mxu0 0.0
    %495 = vmatprep.subr.mxu0 0.0
    %496 = vmatpush2.msra.mxu0 0.0
    %497 = vmatprep.subr.mxu0 0.0
    %498 = vmatpush2.msra.mxu0 0.0
    %499 = vmatprep.subr.mxu0 0.0
    %500 = vmatpush2.msra.mxu0 0.0
    %501 = vmatprep.subr.mxu0 0.0
    %502 = vmatpush2.msra.mxu0 0.0
    %503 = vmatprep.subr.mxu0 0.0
    %504 = vmatpush2.msra.mxu0 0.0
    %505 = vmatprep.mubr.f32.mxu0 0.0
    %506 = vmatmul.mubr.f32.gmra.mxu0 %v439
    %v507 = vpop.f32.mrf.mxu0
    %v508 = vadd.f32 %v190, %v507
    %v509 = vpop.f32.mrf.mxu0
    %510 = vmatprep.mubr.f32.mxu0 0.0
    %511 = vmatmul.mubr.f32.gmra.mxu0 %v440
    %v512 = vpop.f32.mrf.mxu0
    %v513 = vadd.f32 %v195, %v512
    %v514 = vpop.f32.mrf.mxu0
    %515 = vdwg.mxu0
    %v516 = vmax.f32 %v508, -0.01
    %v517 = vmax.f32 %v513, -0.01
    %v518 = vmin.f32 %v516, 0.01
    %v519 = vmin.f32 %v517, 0.01
    %v520 = vsub.f32 %v508, %v518
    %v521 = vsub.f32 %v513, %v519
    %522 = vmatprep.subr.mxu0 0.0
    %523 = vmatpush1.msra.mxu0 %v122
    %524 = vmatprep.subr.mxu0 0.0
    %525 = vmatpush1.msra.mxu0 %v121
    %526 = vmatprep.subr.mxu0 0.0
    %527 = vmatpush1.msra.mxu0 %v120
    %528 = vmatprep.subr.mxu0 0.0
    %529 = vmatpush1.msra.mxu0 %v119
    %530 = vmatprep.subr.mxu0 0.0
    %531 = vmatpush1.msra.mxu0 %v118
    %532 = vmatprep.subr.mxu0 0.0
    %533 = vmatpush1.msra.mxu0 %v117
    %534 = vmatprep.subr.mxu0 0.0
    %535 = vmatpush1.msra.mxu0 %v116
    %536 = vmatprep.subr.mxu0 0.0
    %537 = vmatpush1.msra.mxu0 %v115
    %538 = vmatprep.subr.mxu0 0.0
    %539 = vmatpush1.msra.mxu0 %v114
    %540 = vmatprep.subr.mxu0 0.0
    %541 = vmatpush1.msra.mxu0 %v113
    %542 = vmatprep.subr.mxu0 0.0
    %543 = vmatpush1.msra.mxu0 %v112
    %544 = vmatprep.subr.mxu0 0.0
    %545 = vmatpush1.msra.mxu0 %v111
    %546 = vmatprep.subr.mxu0 0.0
    %547 = vmatpush1.msra.mxu0 %v110
    %548 = vmatprep.subr.mxu0 0.0
    %549 = vmatpush1.msra.mxu0 %v109
    %550 = vmatprep.subr.mxu0 0.0
    %551 = vmatpush1.msra.mxu0 %v108
    %552 = vmatprep.subr.mxu0 0.0
    %553 = vmatpush1.msra.mxu0 %v107
    %554 = vmatprep.subr.mxu0 0.0
    %555 = vmatpush2.msra.mxu0 0.0
    %556 = vmatprep.subr.mxu0 0.0
    %557 = vmatpush2.msra.mxu0 0.0
    %558 = vmatprep.subr.mxu0 0.0
    %559 = vmatpush2.msra.mxu0 0.0
    %560 = vmatprep.subr.mxu0 0.0
    %561 = vmatpush2.msra.mxu0 0.0
    %562 = vmatprep.subr.mxu0 0.0
    %563 = vmatpush2.msra.mxu0 0.0
    %564 = vmatprep.subr.mxu0 0.0
    %565 = vmatpush2.msra.mxu0 0.0
    %566 = vmatprep.subr.mxu0 0.0
    %567 = vmatpush2.msra.mxu0 0.0
    %568 = vmatprep.subr.mxu0 0.0
    %569 = vmatpush2.msra.mxu0 0.0
    %570 = vmatprep.subr.mxu0 0.0
    %571 = vmatpush2.msra.mxu0 0.0
    %572 = vmatprep.subr.mxu0 0.0
    %573 = vmatpush2.msra.mxu0 0.0
    %574 = vmatprep.subr.mxu0 0.0
    %575 = vmatpush2.msra.mxu0 0.0
    %576 = vmatprep.subr.mxu0 0.0
    %577 = vmatpush2.msra.mxu0 0.0
    %578 = vmatprep.subr.mxu0 0.0
    %579 = vmatpush2.msra.mxu0 0.0
    %580 = vmatprep.subr.mxu0 0.0
    %581 = vmatpush2.msra.mxu0 0.0
    %582 = vmatprep.subr.mxu0 0.0
    %583 = vmatpush2.msra.mxu0 0.0
    %584 = vmatprep.subr.mxu0 0.0
    %585 = vmatpush2.msra.mxu0 0.0
    %586 = vmatprep.mubr.f32.mxu0 0.0
    %587 = vmatmul.mubr.f32.gmra.mxu0 %v520
    %v588 = vpop.f32.mrf.mxu0
    %v589 = vadd.f32 %v190, %v588
    %v590 = vpop.f32.mrf.mxu0
    %591 = vmatprep.mubr.f32.mxu0 0.0
    %592 = vmatmul.mubr.f32.gmra.mxu0 %v521
    %v593 = vpop.f32.mrf.mxu0
    %v594 = vadd.f32 %v195, %v593
    %v595 = vpop.f32.mrf.mxu0
    %596 = vdwg.mxu0
    %v597 = vmax.f32 %v589, -0.01
    %v598 = vmax.f32 %v594, -0.01
    %v599 = vmin.f32 %v597, 0.01
    %v600 = vmin.f32 %v598, 0.01
    %v601 = vsub.f32 %v589, %v599
    %v602 = vsub.f32 %v594, %v600
    %603 = vmatprep.subr.mxu0 0.0
    %604 = vmatpush1.msra.mxu0 %v106
    %605 = vmatprep.subr.mxu0 0.0
    %606 = vmatpush1.msra.mxu0 %v105
    %607 = vmatprep.subr.mxu0 0.0
    %608 = vmatpush1.msra.mxu0 %v104
    %609 = vmatprep.subr.mxu0 0.0
    %610 = vmatpush1.msra.mxu0 %v103
    %611 = vmatprep.subr.mxu0 0.0
    %612 = vmatpush1.msra.mxu0 %v102
    %613 = vmatprep.subr.mxu0 0.0
    %614 = vmatpush1.msra.mxu0 %v101
    %615 = vmatprep.subr.mxu0 0.0
    %616 = vmatpush1.msra.mxu0 %v100
    %617 = vmatprep.subr.mxu0 0.0
    %618 = vmatpush1.msra.mxu0 %v99
    %619 = vmatprep.subr.mxu0 0.0
    %620 = vmatpush1.msra.mxu0 %v98
    %621 = vmatprep.subr.mxu0 0.0
    %622 = vmatpush1.msra.mxu0 %v97
    %623 = vmatprep.subr.mxu0 0.0
    %624 = vmatpush1.msra.mxu0 %v96
    %625 = vmatprep.subr.mxu0 0.0
    %626 = vmatpush1.msra.mxu0 %v95
    %627 = vmatprep.subr.mxu0 0.0
    %628 = vmatpush1.msra.mxu0 %v94
    %629 = vmatprep.subr.mxu0 0.0
    %630 = vmatpush1.msra.mxu0 %v93
    %631 = vmatprep.subr.mxu0 0.0
    %632 = vmatpush1.msra.mxu0 %v92
    %633 = vmatprep.subr.mxu0 0.0
    %634 = vmatpush1.msra.mxu0 %v91
    %635 = vmatprep.subr.mxu0 0.0
    %636 = vmatpush2.msra.mxu0 0.0
    %637 = vmatprep.subr.mxu0 0.0
    %638 = vmatpush2.msra.mxu0 0.0
    %639 = vmatprep.subr.mxu0 0.0
    %640 = vmatpush2.msra.mxu0 0.0
    %641 = vmatprep.subr.mxu0 0.0
    %642 = vmatpush2.msra.mxu0 0.0
    %643 = vmatprep.subr.mxu0 0.0
    %644 = vmatpush2.msra.mxu0 0.0
    %645 = vmatprep.subr.mxu0 0.0
    %646 = vmatpush2.msra.mxu0 0.0
    %647 = vmatprep.subr.mxu0 0.0
    %648 = vmatpush2.msra.mxu0 0.0
    %649 = vmatprep.subr.mxu0 0.0
    %650 = vmatpush2.msra.mxu0 0.0
    %651 = vmatprep.subr.mxu0 0.0
    %652 = vmatpush2.msra.mxu0 0.0
    %653 = vmatprep.subr.mxu0 0.0
    %654 = vmatpush2.msra.mxu0 0.0
    %655 = vmatprep.subr.mxu0 0.0
    %656 = vmatpush2.msra.mxu0 0.0
    %657 = vmatprep.subr.mxu0 0.0
    %658 = vmatpush2.msra.mxu0 0.0
    %659 = vmatprep.subr.mxu0 0.0
    %660 = vmatpush2.msra.mxu0 0.0
    %661 = vmatprep.subr.mxu0 0.0
    %662 = vmatpush2.msra.mxu0 0.0
    %663 = vmatprep.subr.mxu0 0.0
    %664 = vmatpush2.msra.mxu0 0.0
    %665 = vmatprep.subr.mxu0 0.0
    %666 = vmatpush2.msra.mxu0 0.0
    %667 = vmatprep.mubr.f32.mxu0 0.0
    %668 = vmatmul.mubr.f32.gmra.mxu0 %v601
    %v669 = vpop.f32.mrf.mxu0
    %v670 = vadd.f32 0.0, %v669
    %v671 = vpop.f32.mrf.mxu0
    %672 = vmatprep.mubr.f32.mxu0 0.0
    %673 = vmatmul.mubr.f32.gmra.mxu0 %v602
    %v674 = vpop.f32.mrf.mxu0
    %v675 = vadd.f32 0.0, %v674
    %v676 = vpop.f32.mrf.mxu0
    %677 = vdwg.mxu0
    %678 = vst [vmem:[#allocation10] sm:$0xff] %v670
    %679 = vst [vmem:[#allocation10 + $0x8] sm:$0xff] %v675
    // Predicated region
    $region34: #{tpu_custom_call.1} parent=1 // pred_check
      _
    $region35: #{tpu_custom_call.1} parent=1 // pred_check_branch
      %681 = sbr.rel (0) target = $region37
    $region36: #{tpu_custom_call.1} parent=1 // pred_region
      %s683 = ssub.s32 256, 256
      %684 = vsyncadd [#allocation4], %s683
      %s685 = sshll.u32 [#allocation10], 4
      %s686 = int_to_ptr.vmem [resolvable:$true] %s685
      %691 = dma.vmem_to_hbm [thread:$0]  %s686, 256, %s4, [#allocation4], 128, 128, 8
    $region37: #{tpu_custom_call.1} parent=1 // pred_fallthru
      _
    // Predicated region
    $region38: #{tpu_custom_call.1} parent=1 // pred_check
      _
    $region39: #{tpu_custom_call.1} parent=1 // pred_check_branch
      %693 = sbr.rel (0) target = $region41
    $region40: #{tpu_custom_call.1} parent=1 // pred_region
      %694 = dma.done [#allocation4], 256
    $region41: #{tpu_custom_call.1} parent=1 // pred_fallthru
      _
    %695 = vsyncpa [#allocation3], 1
    %696 = vsyncpa [#allocation6], 1
    %697 = vsyncpa [#allocation9], 1
    %698 = vsyncpa [#allocation4], 1

</llo_original>
